<compile_context>
chip_gen: v6e
topology: v6e:2x2x1
jax: 0.10.0
libtpu: 0.0.40
codegen_flags: <defaults>
</compile_context>

<pallas_src>
import functools

import jax
import jax.numpy as jnp
from jax.experimental import pallas as pl
from jax.experimental.pallas import tpu as pltpu

_LANE = 128


def _dw_block_kernel(xwin_ref, wdw_ref, b1_ref, wsep_ref, b2_ref, o_ref,
                     *, th, wo, cp, pp, stride):
    # xwin_ref: (Lw, W+2, Cp) pre-padded input row-window (2-row halo included)
    # wdw_ref : (3, 3, Cp)    depthwise weights, BN scale pre-folded
    # b1_ref  : (1, Cp)       folded BN shift (depthwise)
    # wsep_ref: (Cp, Pp)      pointwise weights, BN scale pre-folded
    # b2_ref  : (1, Pp)       folded BN shift (pointwise)
    # o_ref   : (th, wo, Pp)
    sh = stride * (th - 1) + 1        # contiguous input rows needed per tap
    sw = stride * (wo - 1) + 1        # contiguous input cols needed per tap

    acc = jnp.zeros((th, wo, cp), jnp.float32)
    for kh in range(3):
        for kw in range(3):
            # Per-tap VMEM load straight from the ref (static slice).
            tap = xwin_ref[kh:kh + sh, kw:kw + sw, :]
            if stride > 1:            # static Python branch: subsample before FMA
                tap = tap[::stride, ::stride, :]
            acc = acc + tap.astype(jnp.float32) * wdw_ref[kh, kw, :].astype(jnp.float32)

    # BN scale already folded into wdw -> only add the shift, then ReLU.
    h = jnp.maximum(acc + b1_ref[0, :], 0.0)

    # 1x1 pointwise conv as a lane-dense MXU matmul: (th*wo, Cp) @ (Cp, Pp).
    y = jnp.dot(h.reshape(th * wo, cp), wsep_ref[...],
                preferred_element_type=jnp.float32)
    y = jnp.maximum(y + b2_ref[0, :], 0.0)
    o_ref[...] = y.reshape(th, wo, pp).astype(o_ref.dtype)


def _pick_row_tile(Ho, Wo, win_cols, Cp, Pp, stride, budget_bytes=8 * 2**20):
    """Largest divisor of Ho whose double-buffered tile footprint fits the budget."""
    best = 1
    for th in range(1, Ho + 1):
        if Ho % th:
            continue
        lw = (th - 1) * stride + 3
        in_b = lw * win_cols * Cp * 4
        out_b = th * Wo * Pp * 4
        acc_b = th * Wo * Cp * 4
        if 2 * (in_b + out_b) + acc_b <= budget_bytes:
            best = th
    return best


def depthwise_block(x_nhwc, w_dw, w_sep, bn1, bn2, *, stride=1, row_tile=None):
    """x_nhwc: (N,H,W,C); w_dw: (3,3,C); w_sep: (C,P); bn*: (gamma,beta,mean,var,eps)."""
    N, H, W, C = x_nhwc.shape
    P = w_sep.shape[1]
    Ho = (H + 2 - 3) // stride + 1
    Wo = (W + 2 - 3) // stride + 1

    # ---- fold eval-mode BatchNorm into the conv weights (scale) + shift.
    g1, be1, m1, v1, e1 = bn1
    s1 = g1 / jnp.sqrt(v1 + e1)
    sh1 = be1 - m1 * s1
    g2, be2, m2, v2, e2 = bn2
    s2 = g2 / jnp.sqrt(v2 + e2)
    sh2 = be2 - m2 * s2
    w_dw_f = w_dw * s1                       # (3,3,C), per-channel scale folded
    w_sep_f = w_sep * s2[None, :]            # (C,P), per-output-column scale folded

    # ---- pad channel axes to lane width (zeros -> exact, sliced off at the end).
    Cp = max(_LANE, -(-C // _LANE) * _LANE)
    Pp = max(_LANE, -(-P // _LANE) * _LANE)
    wdw_p = jnp.pad(w_dw_f, ((0, 0), (0, 0), (0, Cp - C))).astype(jnp.float32)
    b1_p = jnp.pad(sh1, (0, Cp - C)).reshape(1, Cp).astype(jnp.float32)
    wsep_p = jnp.pad(w_sep_f, ((0, Cp - C), (0, Pp - P))).astype(jnp.float32)
    b2_p = jnp.pad(sh2, (0, Pp - P)).reshape(1, Pp).astype(jnp.float32)

    # ---- row tiling (bounds VMEM per grid step; keeps halo math static).
    if row_tile is None:
        row_tile = _pick_row_tile(Ho, Wo, W + 2, Cp, Pp, stride)
    if Ho % row_tile:
        raise ValueError(f"row_tile {row_tile} must divide output height {Ho}")
    th = row_tile
    rt = Ho // th
    lw = (th - 1) * stride + 3               # input rows per window (incl. 2-row halo)

    # One combined pad (1-px spatial halo + channel pad), then overlapping row
    # windows so BlockSpec blocks never overlap (halo rows are duplicated).
    xpad = jnp.pad(x_nhwc, ((0, 0), (1, 1), (1, 1), (0, Cp - C)))
    xwin = jnp.stack([xpad[:, r * th * stride: r * th * stride + lw]
                      for r in range(rt)], axis=1)        # (N, rt, lw, W+2, Cp)

    kernel = functools.partial(_dw_block_kernel,
                               th=th, wo=Wo, cp=Cp, pp=Pp, stride=stride)

    out_p = pl.pallas_call(
        kernel,
        out_shape=jax.ShapeDtypeStruct((N, Ho, Wo, Pp), x_nhwc.dtype),
        grid=(N, rt),
        in_specs=[
            pl.BlockSpec((None, None, lw, W + 2, Cp), lambda n, r: (n, r, 0, 0, 0)),
            pl.BlockSpec((3, 3, Cp), lambda n, r: (0, 0, 0)),
            pl.BlockSpec((1, Cp), lambda n, r: (0, 0)),
            pl.BlockSpec((Cp, Pp), lambda n, r: (0, 0)),
            pl.BlockSpec((1, Pp), lambda n, r: (0, 0)),
        ],
        out_specs=pl.BlockSpec((None, th, Wo, Pp), lambda n, r: (n, r, 0, 0)),
        compiler_params=pltpu.CompilerParams(
            dimension_semantics=("parallel", "parallel"),
            vmem_limit_bytes=32 * 1024 * 1024),
    )(xwin, wdw_p, b1_p, wsep_p, b2_p)

    return out_p[..., :P]                    # drop lane padding of output channels


def reference(x, w_dw, w_sep, bn1, bn2, stride):
    """Pure-JAX reference (NHWC)."""
    C = x.shape[-1]
    dn = jax.lax.conv_dimension_numbers(x.shape, (3, 3, 1, C),
                                        ("NHWC", "HWIO", "NHWC"))
    h = jax.lax.conv_general_dilated(x, w_dw.reshape(3, 3, 1, C),
                                     (stride, stride), ((1, 1), (1, 1)),
                                     dimension_numbers=dn,
                                     feature_group_count=C)
    g1, b1, m1, v1, e1 = bn1
    h = (h - m1) * (g1 / jnp.sqrt(v1 + e1)) + b1
    h = jnp.maximum(h, 0.0)
    y = jnp.einsum("nhwc,cp->nhwp", h, w_sep)
    g2, b2, m2, v2, e2 = bn2
    y = (y - m2) * (g2 / jnp.sqrt(v2 + e2)) + b2
    return jnp.maximum(y, 0.0)


if __name__ == "__main__":
    key = jax.random.PRNGKey(0)
    N, C, H, W, P = 2, 8, 16, 16, 16          # inplanes=8, planes=16
    eps = 1e-5
    ks = jax.random.split(key, 8)

    # PyTorch forward takes NCHW; build that, then go channels-last for the kernel.
    x_nchw = jax.random.normal(ks[0], (N, C, H, W), jnp.float32)
    x = jnp.transpose(x_nchw, (0, 2, 3, 1))                      # NHWC

    # conv_dw.weight is (C,1,3,3) in torch; here w_dw[:, :, c] is channel c's filter.
    w_dw = jax.random.normal(ks[1], (3, 3, C), jnp.float32) * 0.2
    # conv_sep.weight is (P,C,1,1) in torch; here stored transposed as (C,P).
    w_sep = jax.random.normal(ks[2], (C, P), jnp.float32) * 0.2

    bn1 = (jax.random.uniform(ks[3], (C,), minval=0.5, maxval=1.5),
           jax.random.normal(ks[4], (C,)) * 0.1,
           jax.random.normal(ks[5], (C,)) * 0.1,
           jax.random.uniform(ks[6], (C,), minval=0.5, maxval=1.5),
           eps)
    ks2 = jax.random.split(ks[7], 4)
    bn2 = (jax.random.uniform(ks2[0], (P,), minval=0.5, maxval=1.5),
           jax.random.normal(ks2[1], (P,)) * 0.1,
           jax.random.normal(ks2[2], (P,)) * 0.1,
           jax.random.uniform(ks2[3], (P,), minval=0.5, maxval=1.5),
           eps)

    # stride=1 (module default): Ho=Wo=16, 2 row tiles of 8 -> grid (2, 2).
    out = depthwise_block(x, w_dw, w_sep, bn1, bn2, stride=1, row_tile=8)
    out = jax.block_until_ready(out)
    ref = reference(x, w_dw, w_sep, bn1, bn2, 1)
    assert out.shape == ref.shape == (N, H, W, P)
    assert jnp.allclose(out, ref, rtol=1e-4, atol=1e-4), \
        float(jnp.max(jnp.abs(out - ref)))

    # stride=2 (MobileNet downsampling block): Ho=Wo=8, 2 row tiles of 4.
    out2 = depthwise_block(x, w_dw, w_sep, bn1, bn2, stride=2, row_tile=4)
    out2 = jax.block_until_ready(out2)
    ref2 = reference(x, w_dw, w_sep, bn1, bn2, 2)
    assert out2.shape == ref2.shape == (N, H // 2, W // 2, P)
    assert jnp.allclose(out2, ref2, rtol=1e-4, atol=1e-4), \
        float(jnp.max(jnp.abs(out2 - ref2)))

    print("KERNEL_OK")
</pallas_src>

<mosaic_0001>
module attributes {stable_mosaic.version = 11 : i64} {
  func.func @_dw_block_kernel(%arg0: i32, %arg1: i32, %arg2: memref<1x1x10x18x128xf32, #tpu.memory_space<vmem>>, %arg3: memref<3x3x128xf32, #tpu.memory_space<vmem>>, %arg4: memref<1x128xf32, #tpu.memory_space<vmem>>, %arg5: memref<128x128xf32, #tpu.memory_space<vmem>>, %arg6: memref<1x128xf32, #tpu.memory_space<vmem>>, %arg7: memref<1x8x16x128xf32, #tpu.memory_space<vmem>>) attributes {dimension_semantics = [#tpu.dimension_semantics<parallel>, #tpu.dimension_semantics<parallel>], iteration_bounds = array<i64: 2, 2>, scalar_prefetch = 0 : i64, scratch_operands = 0 : i64, tpu.core_type = #tpu.core_type<tc>, window_params = [{transform_indices = @transform_0, window_bounds = array<i64: 1, 1, 10, 18, 128>}, {pipeline_mode = #tpu.pipeline_mode<synchronous>, transform_indices = @transform_1, window_bounds = array<i64: 3, 3, 128>}, {pipeline_mode = #tpu.pipeline_mode<synchronous>, transform_indices = @transform_2, window_bounds = array<i64: 1, 128>}, {pipeline_mode = #tpu.pipeline_mode<synchronous>, transform_indices = @transform_3, window_bounds = array<i64: 128, 128>}, {pipeline_mode = #tpu.pipeline_mode<synchronous>, transform_indices = @transform_4, window_bounds = array<i64: 1, 128>}, {transform_indices = @transform_5, window_bounds = array<i64: 1, 8, 16, 128>}]} {
    %cst = arith.constant 0.000000e+00 : f32
    %0 = vector.broadcast %cst : f32 to vector<8x16x128xf32>
    %c0 = arith.constant 0 : index
    %c0_0 = arith.constant 0 : index
    %c0_1 = arith.constant 0 : index
    %c0_2 = arith.constant 0 : index
    %c0_3 = arith.constant 0 : index
    %1 = vector.load %arg2[%c0, %c0_0, %c0_1, %c0_2, %c0_3] : memref<1x1x10x18x128xf32, #tpu.memory_space<vmem>>, vector<1x1x8x16x128xf32>
    %2 = vector.shape_cast %1 : vector<1x1x8x16x128xf32> to vector<8x16x128xf32>
    %c0_4 = arith.constant 0 : index
    %c0_5 = arith.constant 0 : index
    %c0_6 = arith.constant 0 : index
    %3 = vector.load %arg3[%c0_4, %c0_5, %c0_6] : memref<3x3x128xf32, #tpu.memory_space<vmem>>, vector<1x1x128xf32>
    %4 = vector.shape_cast %3 : vector<1x1x128xf32> to vector<128xf32>
    %5 = vector.shape_cast %4 : vector<128xf32> to vector<1x1x128xf32>
    %6 = vector.broadcast %5 : vector<1x1x128xf32> to vector<8x16x128xf32>
    %7 = arith.mulf %2, %6 : vector<8x16x128xf32>
    %8 = arith.addf %0, %7 : vector<8x16x128xf32>
    %c0_7 = arith.constant 0 : index
    %c0_8 = arith.constant 0 : index
    %c0_9 = arith.constant 0 : index
    %c1 = arith.constant 1 : index
    %c0_10 = arith.constant 0 : index
    %9 = vector.load %arg2[%c0_7, %c0_8, %c0_9, %c1, %c0_10] : memref<1x1x10x18x128xf32, #tpu.memory_space<vmem>>, vector<1x1x8x16x128xf32>
    %10 = vector.shape_cast %9 : vector<1x1x8x16x128xf32> to vector<8x16x128xf32>
    %c0_11 = arith.constant 0 : index
    %c1_12 = arith.constant 1 : index
    %c0_13 = arith.constant 0 : index
    %11 = vector.load %arg3[%c0_11, %c1_12, %c0_13] : memref<3x3x128xf32, #tpu.memory_space<vmem>>, vector<1x1x128xf32>
    %12 = vector.shape_cast %11 : vector<1x1x128xf32> to vector<128xf32>
    %13 = vector.shape_cast %12 : vector<128xf32> to vector<1x1x128xf32>
    %14 = vector.broadcast %13 : vector<1x1x128xf32> to vector<8x16x128xf32>
    %15 = arith.mulf %10, %14 : vector<8x16x128xf32>
    %16 = arith.addf %8, %15 : vector<8x16x128xf32>
    %c0_14 = arith.constant 0 : index
    %c0_15 = arith.constant 0 : index
    %c0_16 = arith.constant 0 : index
    %c2 = arith.constant 2 : index
    %c0_17 = arith.constant 0 : index
    %17 = vector.load %arg2[%c0_14, %c0_15, %c0_16, %c2, %c0_17] : memref<1x1x10x18x128xf32, #tpu.memory_space<vmem>>, vector<1x1x8x16x128xf32>
    %18 = vector.shape_cast %17 : vector<1x1x8x16x128xf32> to vector<8x16x128xf32>
    %c0_18 = arith.constant 0 : index
    %c2_19 = arith.constant 2 : index
    %c0_20 = arith.constant 0 : index
    %19 = vector.load %arg3[%c0_18, %c2_19, %c0_20] : memref<3x3x128xf32, #tpu.memory_space<vmem>>, vector<1x1x128xf32>
    %20 = vector.shape_cast %19 : vector<1x1x128xf32> to vector<128xf32>
    %21 = vector.shape_cast %20 : vector<128xf32> to vector<1x1x128xf32>
    %22 = vector.broadcast %21 : vector<1x1x128xf32> to vector<8x16x128xf32>
    %23 = arith.mulf %18, %22 : vector<8x16x128xf32>
    %24 = arith.addf %16, %23 : vector<8x16x128xf32>
    %c0_21 = arith.constant 0 : index
    %c0_22 = arith.constant 0 : index
    %c1_23 = arith.constant 1 : index
    %c0_24 = arith.constant 0 : index
    %c0_25 = arith.constant 0 : index
    %25 = vector.load %arg2[%c0_21, %c0_22, %c1_23, %c0_24, %c0_25] : memref<1x1x10x18x128xf32, #tpu.memory_space<vmem>>, vector<1x1x8x16x128xf32>
    %26 = vector.shape_cast %25 : vector<1x1x8x16x128xf32> to vector<8x16x128xf32>
    %c1_26 = arith.constant 1 : index
    %c0_27 = arith.constant 0 : index
    %c0_28 = arith.constant 0 : index
    %27 = vector.load %arg3[%c1_26, %c0_27, %c0_28] : memref<3x3x128xf32, #tpu.memory_space<vmem>>, vector<1x1x128xf32>
    %28 = vector.shape_cast %27 : vector<1x1x128xf32> to vector<128xf32>
    %29 = vector.shape_cast %28 : vector<128xf32> to vector<1x1x128xf32>
    %30 = vector.broadcast %29 : vector<1x1x128xf32> to vector<8x16x128xf32>
    %31 = arith.mulf %26, %30 : vector<8x16x128xf32>
    %32 = arith.addf %24, %31 : vector<8x16x128xf32>
    %c0_29 = arith.constant 0 : index
    %c0_30 = arith.constant 0 : index
    %c1_31 = arith.constant 1 : index
    %c1_32 = arith.constant 1 : index
    %c0_33 = arith.constant 0 : index
    %33 = vector.load %arg2[%c0_29, %c0_30, %c1_31, %c1_32, %c0_33] : memref<1x1x10x18x128xf32, #tpu.memory_space<vmem>>, vector<1x1x8x16x128xf32>
    %34 = vector.shape_cast %33 : vector<1x1x8x16x128xf32> to vector<8x16x128xf32>
    %c1_34 = arith.constant 1 : index
    %c1_35 = arith.constant 1 : index
    %c0_36 = arith.constant 0 : index
    %35 = vector.load %arg3[%c1_34, %c1_35, %c0_36] : memref<3x3x128xf32, #tpu.memory_space<vmem>>, vector<1x1x128xf32>
    %36 = vector.shape_cast %35 : vector<1x1x128xf32> to vector<128xf32>
    %37 = vector.shape_cast %36 : vector<128xf32> to vector<1x1x128xf32>
    %38 = vector.broadcast %37 : vector<1x1x128xf32> to vector<8x16x128xf32>
    %39 = arith.mulf %34, %38 : vector<8x16x128xf32>
    %40 = arith.addf %32, %39 : vector<8x16x128xf32>
    %c0_37 = arith.constant 0 : index
    %c0_38 = arith.constant 0 : index
    %c1_39 = arith.constant 1 : index
    %c2_40 = arith.constant 2 : index
    %c0_41 = arith.constant 0 : index
    %41 = vector.load %arg2[%c0_37, %c0_38, %c1_39, %c2_40, %c0_41] : memref<1x1x10x18x128xf32, #tpu.memory_space<vmem>>, vector<1x1x8x16x128xf32>
    %42 = vector.shape_cast %41 : vector<1x1x8x16x128xf32> to vector<8x16x128xf32>
    %c1_42 = arith.constant 1 : index
    %c2_43 = arith.constant 2 : index
    %c0_44 = arith.constant 0 : index
    %43 = vector.load %arg3[%c1_42, %c2_43, %c0_44] : memref<3x3x128xf32, #tpu.memory_space<vmem>>, vector<1x1x128xf32>
    %44 = vector.shape_cast %43 : vector<1x1x128xf32> to vector<128xf32>
    %45 = vector.shape_cast %44 : vector<128xf32> to vector<1x1x128xf32>
    %46 = vector.broadcast %45 : vector<1x1x128xf32> to vector<8x16x128xf32>
    %47 = arith.mulf %42, %46 : vector<8x16x128xf32>
    %48 = arith.addf %40, %47 : vector<8x16x128xf32>
    %c0_45 = arith.constant 0 : index
    %c0_46 = arith.constant 0 : index
    %c2_47 = arith.constant 2 : index
    %c0_48 = arith.constant 0 : index
    %c0_49 = arith.constant 0 : index
    %49 = vector.load %arg2[%c0_45, %c0_46, %c2_47, %c0_48, %c0_49] : memref<1x1x10x18x128xf32, #tpu.memory_space<vmem>>, vector<1x1x8x16x128xf32>
    %50 = vector.shape_cast %49 : vector<1x1x8x16x128xf32> to vector<8x16x128xf32>
    %c2_50 = arith.constant 2 : index
    %c0_51 = arith.constant 0 : index
    %c0_52 = arith.constant 0 : index
    %51 = vector.load %arg3[%c2_50, %c0_51, %c0_52] : memref<3x3x128xf32, #tpu.memory_space<vmem>>, vector<1x1x128xf32>
    %52 = vector.shape_cast %51 : vector<1x1x128xf32> to vector<128xf32>
    %53 = vector.shape_cast %52 : vector<128xf32> to vector<1x1x128xf32>
    %54 = vector.broadcast %53 : vector<1x1x128xf32> to vector<8x16x128xf32>
    %55 = arith.mulf %50, %54 : vector<8x16x128xf32>
    %56 = arith.addf %48, %55 : vector<8x16x128xf32>
    %c0_53 = arith.constant 0 : index
    %c0_54 = arith.constant 0 : index
    %c2_55 = arith.constant 2 : index
    %c1_56 = arith.constant 1 : index
    %c0_57 = arith.constant 0 : index
    %57 = vector.load %arg2[%c0_53, %c0_54, %c2_55, %c1_56, %c0_57] : memref<1x1x10x18x128xf32, #tpu.memory_space<vmem>>, vector<1x1x8x16x128xf32>
    %58 = vector.shape_cast %57 : vector<1x1x8x16x128xf32> to vector<8x16x128xf32>
    %c2_58 = arith.constant 2 : index
    %c1_59 = arith.constant 1 : index
    %c0_60 = arith.constant 0 : index
    %59 = vector.load %arg3[%c2_58, %c1_59, %c0_60] : memref<3x3x128xf32, #tpu.memory_space<vmem>>, vector<1x1x128xf32>
    %60 = vector.shape_cast %59 : vector<1x1x128xf32> to vector<128xf32>
    %61 = vector.shape_cast %60 : vector<128xf32> to vector<1x1x128xf32>
    %62 = vector.broadcast %61 : vector<1x1x128xf32> to vector<8x16x128xf32>
    %63 = arith.mulf %58, %62 : vector<8x16x128xf32>
    %64 = arith.addf %56, %63 : vector<8x16x128xf32>
    %c0_61 = arith.constant 0 : index
    %c0_62 = arith.constant 0 : index
    %c2_63 = arith.constant 2 : index
    %c2_64 = arith.constant 2 : index
    %c0_65 = arith.constant 0 : index
    %65 = vector.load %arg2[%c0_61, %c0_62, %c2_63, %c2_64, %c0_65] : memref<1x1x10x18x128xf32, #tpu.memory_space<vmem>>, vector<1x1x8x16x128xf32>
    %66 = vector.shape_cast %65 : vector<1x1x8x16x128xf32> to vector<8x16x128xf32>
    %c2_66 = arith.constant 2 : index
    %c2_67 = arith.constant 2 : index
    %c0_68 = arith.constant 0 : index
    %67 = vector.load %arg3[%c2_66, %c2_67, %c0_68] : memref<3x3x128xf32, #tpu.memory_space<vmem>>, vector<1x1x128xf32>
    %68 = vector.shape_cast %67 : vector<1x1x128xf32> to vector<128xf32>
    %69 = vector.shape_cast %68 : vector<128xf32> to vector<1x1x128xf32>
    %70 = vector.broadcast %69 : vector<1x1x128xf32> to vector<8x16x128xf32>
    %71 = arith.mulf %66, %70 : vector<8x16x128xf32>
    %72 = arith.addf %64, %71 : vector<8x16x128xf32>
    %c0_69 = arith.constant 0 : index
    %c0_70 = arith.constant 0 : index
    %73 = vector.load %arg4[%c0_69, %c0_70] : memref<1x128xf32, #tpu.memory_space<vmem>>, vector<1x128xf32>
    %74 = vector.shape_cast %73 : vector<1x128xf32> to vector<128xf32>
    %75 = vector.shape_cast %74 : vector<128xf32> to vector<1x1x128xf32>
    %76 = vector.broadcast %75 : vector<1x1x128xf32> to vector<8x16x128xf32>
    %77 = arith.addf %72, %76 : vector<8x16x128xf32>
    %cst_71 = arith.constant 0.000000e+00 : f32
    %78 = vector.broadcast %cst_71 : f32 to vector<8x16x128xf32>
    %79 = arith.maximumf %77, %78 : vector<8x16x128xf32>
    %80 = vector.shape_cast %79 : vector<8x16x128xf32> to vector<128x128xf32>
    %c0_72 = arith.constant 0 : index
    %c0_73 = arith.constant 0 : index
    %81 = vector.load %arg5[%c0_72, %c0_73] : memref<128x128xf32, #tpu.memory_space<vmem>>, vector<128x128xf32>
    %cst_74 = arith.constant dense<0.000000e+00> : vector<128x128xf32>
    %82 = tpu.matmul %80, %81, %cst_74 {dimension_numbers = #tpu.dot_dimension_numbers<[1], [0], [0], [1], [0, 0, 1, 1], [], []>} : vector<128x128xf32>, vector<128x128xf32>, vector<128x128xf32> -> vector<128x128xf32>
    %c0_75 = arith.constant 0 : index
    %c0_76 = arith.constant 0 : index
    %83 = vector.load %arg6[%c0_75, %c0_76] : memref<1x128xf32, #tpu.memory_space<vmem>>, vector<1x128xf32>
    %84 = vector.shape_cast %83 : vector<1x128xf32> to vector<128xf32>
    %85 = vector.shape_cast %84 : vector<128xf32> to vector<1x128xf32>
    %86 = vector.broadcast %85 : vector<1x128xf32> to vector<128x128xf32>
    %87 = arith.addf %82, %86 : vector<128x128xf32>
    %cst_77 = arith.constant 0.000000e+00 : f32
    %88 = vector.broadcast %cst_77 : f32 to vector<128x128xf32>
    %89 = arith.maximumf %87, %88 : vector<128x128xf32>
    %90 = vector.shape_cast %89 : vector<128x128xf32> to vector<8x16x128xf32>
    %c0_78 = arith.constant 0 : index
    %c0_79 = arith.constant 0 : index
    %c0_80 = arith.constant 0 : index
    %c0_81 = arith.constant 0 : index
    %91 = vector.load %arg7[%c0_78, %c0_79, %c0_80, %c0_81] : memref<1x8x16x128xf32, #tpu.memory_space<vmem>>, vector<1x8x16x128xf32>
    %92 = vector.shape_cast %91 : vector<1x8x16x128xf32> to vector<8x16x128xf32>
    %93 = vector.shape_cast %90 : vector<8x16x128xf32> to vector<1x8x16x128xf32>
    tpu.vector_store %arg7[%c0_78, %c0_79, %c0_80, %c0_81], %93 {strides = array<i32>} : memref<1x8x16x128xf32, #tpu.memory_space<vmem>>, vector<1x8x16x128xf32>,
    return
  }
  func.func @transform_0(%arg0: i32, %arg1: i32) -> (i32, i32, i32, i32, i32) {
    %c0_i32 = arith.constant 0 : i32
    %c0_i32_0 = arith.constant 0 : i32
    %c0_i32_1 = arith.constant 0 : i32
    %c0_i32_2 = arith.constant 0 : i32
    return %arg0, %arg1, %c0_i32, %c0_i32_0, %c0_i32_1 : i32, i32, i32, i32, i32
  }
  func.func @transform_1(%arg0: i32, %arg1: i32) -> (i32, i32, i32) {
    %c0_i32 = arith.constant 0 : i32
    %c0_i32_0 = arith.constant 0 : i32
    %c0_i32_1 = arith.constant 0 : i32
    %c0_i32_2 = arith.constant 0 : i32
    return %c0_i32, %c0_i32_0, %c0_i32_1 : i32, i32, i32
  }
  func.func @transform_2(%arg0: i32, %arg1: i32) -> (i32, i32) {
    %c0_i32 = arith.constant 0 : i32
    %c0_i32_0 = arith.constant 0 : i32
    %c0_i32_1 = arith.constant 0 : i32
    return %c0_i32, %c0_i32_0 : i32, i32
  }
  func.func @transform_3(%arg0: i32, %arg1: i32) -> (i32, i32) {
    %c0_i32 = arith.constant 0 : i32
    %c0_i32_0 = arith.constant 0 : i32
    %c0_i32_1 = arith.constant 0 : i32
    return %c0_i32, %c0_i32_0 : i32, i32
  }
  func.func @transform_4(%arg0: i32, %arg1: i32) -> (i32, i32) {
    %c0_i32 = arith.constant 0 : i32
    %c0_i32_0 = arith.constant 0 : i32
    %c0_i32_1 = arith.constant 0 : i32
    return %c0_i32, %c0_i32_0 : i32, i32
  }
  func.func @transform_5(%arg0: i32, %arg1: i32) -> (i32, i32, i32, i32) {
    %c0_i32 = arith.constant 0 : i32
    %c0_i32_0 = arith.constant 0 : i32
    %c0_i32_1 = arith.constant 0 : i32
    return %arg0, %arg1, %c0_i32, %c0_i32_0 : i32, i32, i32, i32
  }
}

</mosaic_0001>

<llo_original>
// kernel: tpu_custom_call.1
$region0: #{tpu_custom_call.1}
  #allocation0 [shape = 'u32[]', space=smem, size = 0x4, offset = 0x4, fixed_abs, tag = 'smem constant byte address 0x4 - core index']
  #allocation1 [shape = 'u32[144,128]{1,0:T(1,128)}', space=vmem, size = 0x12000, scoped, tag = 'internal scratch']
  %s0 = inlined_call_operand.vmem [shape: f32[2,2,10,18,128], index: 0, kind: input, shape index: {}]
  %s1 = inlined_call_operand.vmem [shape: f32[3,3,128], index: 1, kind: input, shape index: {}]
  %s2 = inlined_call_operand.vmem [shape: f32[1,128], index: 2, kind: input, shape index: {}]
  %s3 = inlined_call_operand.vmem [shape: f32[128,128], index: 3, kind: input, shape index: {}]
  %s4 = inlined_call_operand.vmem [shape: f32[1,128], index: 4, kind: input, shape index: {}]
  %s5 = inlined_call_operand.hbm [shape: f32[2,16,16,128], index: 5, kind: output, shape index: {}]
  %s6 = sld [smem:[#allocation0]]
  $region53: #{tpu_custom_call.1} parent=0
    _
  %s8 = ssub.s32 1, %s6
  %s9 = scalar_select 0, %s8, %s6
  $region1: #{tpu_custom_call.1} parent=0
    #allocation2 [shape = 'u8[131072]{0}', space=vmem, size = 0x20000, scoped, tag = 'output window, operand 0']
    #allocation3 [shape = 's32[2]{0}', space=sflag, size = 0x8, scoped, tag = 'scoped memory for tpu_custom_call.1']
    %10 = vsyncpa [#allocation3], 0
    %s11 = scalar_lea.sflag [#allocation3], 1
    %12 = vsyncpa %s11, 0
    loop: start=0, step=1, limit=6
    $region2: #{tpu_custom_call.1} parent=1 // loop_pre_header
      _
    $region3: #{tpu_custom_call.1} parent=1 // loop_header
      %s14 = sphi 0, %s18
      %p15 = scmp.ge.s32.totalorder %s14, 6
      %s21 = sphi 0, %s33
      %s22 = sphi 0, %s29
      %s23 = sphi 0, %s21
      %s24 = sphi 0, %s22
      %s25 = sphi 0, %s23
      %s26 = sphi 0, %s24
      %s38 = sphi 0, %s40
      %s41 = sphi 0, %s38
      %s42 = sphi 0, %s41
      %s58 = sphi 0, %s42
      %s62 = sphi 0, %s62
      %s64 = sphi 0, %s62
      %s65 = sphi 0, %s64
      %s79 = sphi 0, %s65
      %s83 = sphi 0, %s83
      %s85 = sphi 0, %s83
      %s86 = sphi 0, %s85
      %s100 = sphi 0, %s86
      %s104 = sphi 0, %s104
      %s106 = sphi 0, %s104
      %s107 = sphi 0, %s106
      %s121 = sphi 0, %s107
      %s125 = sphi 0, %s125
      %s127 = sphi 0, %s125
      %s128 = sphi 0, %s127
      %s142 = sphi 0, %s128
      %s150 = sphi 0, %s152
      %s153 = sphi 0, %s150
      %s154 = sphi 0, %s153
      %s170 = sphi 0, %s154
    $region4: #{tpu_custom_call.1} parent=1 // loop_header_branch
      %17 = sbr.rel (%p15) target = $region8
    $region5: #{tpu_custom_call.1} parent=1 // loop_body
      %s19 = ssub.s32 %s14, 1
      %s20 = ssub.s32 %s14, 2
      %s27 = sadd.s32 1, %s22
      %p28 = scmp.ge.s32.totalorder %s27, 2
      %s29 = scalar_select %p28, 0, %s27
      %s30 = sadd.s32 1, %s21
      %s31 = scalar_select %p28, %s30, %s21
      %p32 = scmp.ge.s32.totalorder %s31, 2
      %s33 = scalar_select %p32, 0, %s31
      %s34 = ssub.s32 %s21, %s33
      %s35 = ssub.s32 %s22, %s29
      %s36 = sor.u32 %s34, %s35
      %p37 = scmp.eq.s32.totalorder %s36, 0
      %s39 = sadd.s32 %s38, 1
      %s40 = scalar_select %p37, %s38, %s39
      %p43 = pneg %p37
      %p44 = scmp.eq.s32.totalorder %s14, 3
      %p45 = por %p43, %p44
      %p46 = scmp.ne.s32.totalorder %s38, %s41
      %p47 = scmp.eq.s32.totalorder %s14, 0
      %p48 = por %p46, %p47
      %p49 = scmp.ne.s32.totalorder %s38, %s41
      %p50 = scmp.eq.s32.totalorder %s19, 3
      %p51 = por %p49, %p50
      %p52 = scmp.ne.s32.totalorder %s41, %s42
      %p53 = scmp.eq.s32.totalorder %s19, 0
      %p54 = por %p52, %p53
      %p55 = scmp.ne.s32.totalorder %s41, %s42
      %p56 = scmp.eq.s32.totalorder %s20, 3
      %p57 = por %p55, %p56
      %p59 = scmp.ne.s32.totalorder %s42, %s58
      %p60 = scmp.eq.s32.totalorder %s20, 0
      %p61 = por %p59, %p60
      %s63 = sadd.s32 %s62, 1
      %p66 = scmp.eq.s32.totalorder %s14, 3
      %p67 = scmp.ne.s32.totalorder %s62, %s64
      %p68 = scmp.eq.s32.totalorder %s14, 0
      %p69 = por %p67, %p68
      %p70 = scmp.ne.s32.totalorder %s62, %s64
      %p71 = scmp.eq.s32.totalorder %s19, 3
      %p72 = por %p70, %p71
      %p73 = scmp.ne.s32.totalorder %s64, %s65
      %p74 = scmp.eq.s32.totalorder %s19, 0
      %p75 = por %p73, %p74
      %p76 = scmp.ne.s32.totalorder %s64, %s65
      %p77 = scmp.eq.s32.totalorder %s20, 3
      %p78 = por %p76, %p77
      %p80 = scmp.ne.s32.totalorder %s65, %s79
      %p81 = scmp.eq.s32.totalorder %s20, 0
      %p82 = por %p80, %p81
      %s84 = sadd.s32 %s83, 1
      %p87 = scmp.eq.s32.totalorder %s14, 3
      %p88 = scmp.ne.s32.totalorder %s83, %s85
      %p89 = scmp.eq.s32.totalorder %s14, 0
      %p90 = por %p88, %p89
      %p91 = scmp.ne.s32.totalorder %s83, %s85
      %p92 = scmp.eq.s32.totalorder %s19, 3
      %p93 = por %p91, %p92
      %p94 = scmp.ne.s32.totalorder %s85, %s86
      %p95 = scmp.eq.s32.totalorder %s19, 0
      %p96 = por %p94, %p95
      %p97 = scmp.ne.s32.totalorder %s85, %s86
      %p98 = scmp.eq.s32.totalorder %s20, 3
      %p99 = por %p97, %p98
      %p101 = scmp.ne.s32.totalorder %s86, %s100
      %p102 = scmp.eq.s32.totalorder %s20, 0
      %p103 = por %p101, %p102
      %s105 = sadd.s32 %s104, 1
      %p108 = scmp.eq.s32.totalorder %s14, 3
      %p109 = scmp.ne.s32.totalorder %s104, %s106
      %p110 = scmp.eq.s32.totalorder %s14, 0
      %p111 = por %p109, %p110
      %p112 = scmp.ne.s32.totalorder %s104, %s106
      %p113 = scmp.eq.s32.totalorder %s19, 3
      %p114 = por %p112, %p113
      %p115 = scmp.ne.s32.totalorder %s106, %s107
      %p116 = scmp.eq.s32.totalorder %s19, 0
      %p117 = por %p115, %p116
      %p118 = scmp.ne.s32.totalorder %s106, %s107
      %p119 = scmp.eq.s32.totalorder %s20, 3
      %p120 = por %p118, %p119
      %p122 = scmp.ne.s32.totalorder %s107, %s121
      %p123 = scmp.eq.s32.totalorder %s20, 0
      %p124 = por %p122, %p123
      %s126 = sadd.s32 %s125, 1
      %p129 = scmp.eq.s32.totalorder %s14, 3
      %p130 = scmp.ne.s32.totalorder %s125, %s127
      %p131 = scmp.eq.s32.totalorder %s14, 0
      %p132 = por %p130, %p131
      %p133 = scmp.ne.s32.totalorder %s125, %s127
      %p134 = scmp.eq.s32.totalorder %s19, 3
      %p135 = por %p133, %p134
      %p136 = scmp.ne.s32.totalorder %s127, %s128
      %p137 = scmp.eq.s32.totalorder %s19, 0
      %p138 = por %p136, %p137
      %p139 = scmp.ne.s32.totalorder %s127, %s128
      %p140 = scmp.eq.s32.totalorder %s20, 3
      %p141 = por %p139, %p140
      %p143 = scmp.ne.s32.totalorder %s128, %s142
      %p144 = scmp.eq.s32.totalorder %s20, 0
      %p145 = por %p143, %p144
      %s146 = ssub.s32 %s21, %s33
      %s147 = ssub.s32 %s22, %s29
      %s148 = sor.u32 %s146, %s147
      %p149 = scmp.eq.s32.totalorder %s148, 0
      %s151 = sadd.s32 %s150, 1
      %s152 = scalar_select %p149, %s150, %s151
      %p155 = pneg %p149
      %p156 = scmp.eq.s32.totalorder %s14, 3
      %p157 = por %p155, %p156
      %p158 = scmp.ne.s32.totalorder %s150, %s153
      %p159 = scmp.eq.s32.totalorder %s14, 0
      %p160 = por %p158, %p159
      %p161 = scmp.ne.s32.totalorder %s150, %s153
      %p162 = scmp.eq.s32.totalorder %s19, 3
      %p163 = por %p161, %p162
      %p164 = scmp.ne.s32.totalorder %s153, %s154
      %p165 = scmp.eq.s32.totalorder %s19, 0
      %p166 = por %p164, %p165
      %p167 = scmp.ne.s32.totalorder %s153, %s154
      %p168 = scmp.eq.s32.totalorder %s20, 3
      %p169 = por %p167, %p168
      %p171 = scmp.ne.s32.totalorder %s154, %s170
      %p172 = scmp.eq.s32.totalorder %s20, 0
      %p173 = por %p171, %p172
      %p174 = scmp.le.s32.totalorder 1, %s14
      %p175 = scmp.lt.s32.totalorder %s14, 5
      %p176 = pnand %p174, %p175
      %p177 = pneg %p176
      // Predicated region
      $region9: #{tpu_custom_call.1} parent=5 // pred_check
        _
      $region10: #{tpu_custom_call.1} parent=5 // pred_check_branch
        %179 = sbr.rel (%p176) target = $region12
      $region11: #{tpu_custom_call.1} parent=5 // pred_region
        %s180 = ssub.s32 %s14, 1
        // Predicated region
        $region13: #{tpu_custom_call.1} parent=11 // pred_check
          %p181 = pneg %p75
        $region14: #{tpu_custom_call.1} parent=11 // pred_check_branch
          %183 = sbr.rel (%p181) target = $region16
        $region15: #{tpu_custom_call.1} parent=11 // pred_region
          _
        $region16: #{tpu_custom_call.1} parent=11 // pred_fallthru
          _
        // Predicated region
        $region17: #{tpu_custom_call.1} parent=11 // pred_check
          %p184 = pneg %p96
        $region18: #{tpu_custom_call.1} parent=11 // pred_check_branch
          %186 = sbr.rel (%p184) target = $region20
        $region19: #{tpu_custom_call.1} parent=11 // pred_region
          _
        $region20: #{tpu_custom_call.1} parent=11 // pred_fallthru
          _
        // Predicated region
        $region21: #{tpu_custom_call.1} parent=11 // pred_check
          %p187 = pneg %p117
        $region22: #{tpu_custom_call.1} parent=11 // pred_check_branch
          %189 = sbr.rel (%p187) target = $region24
        $region23: #{tpu_custom_call.1} parent=11 // pred_region
          _
        $region24: #{tpu_custom_call.1} parent=11 // pred_fallthru
          _
        // Predicated region
        $region25: #{tpu_custom_call.1} parent=11 // pred_check
          %p190 = pneg %p138
        $region26: #{tpu_custom_call.1} parent=11 // pred_check_branch
          %192 = sbr.rel (%p190) target = $region28
        $region27: #{tpu_custom_call.1} parent=11 // pred_region
          _
        $region28: #{tpu_custom_call.1} parent=11 // pred_fallthru
          _
      $region12: #{tpu_custom_call.1} parent=5 // pred_fallthru
        _
      %p193 = scmp.lt.s32.totalorder %s14, 4
      // Predicated region
      $region29: #{tpu_custom_call.1} parent=5 // pred_check
        %p194 = pneg %p193
      $region30: #{tpu_custom_call.1} parent=5 // pred_check_branch
        %196 = sbr.rel (%p194) target = $region32
      $region31: #{tpu_custom_call.1} parent=5 // pred_region
        // Predicated region
        $region33: #{tpu_custom_call.1} parent=31 // pred_check
          %p197 = pneg %p48
        $region34: #{tpu_custom_call.1} parent=31 // pred_check_branch
          %199 = sbr.rel (%p197) target = $region36
        $region35: #{tpu_custom_call.1} parent=31 // pred_region
          %p200 = scmp.lt.s32.totalorder %s21, 1
          %s201 = scalar_select %p200, %s21, 1
          %p202 = scmp.lt.s32.totalorder %s22, 1
          %s203 = scalar_select %p202, %s22, 1
          %s204 = smul.addr %s203, 30
          %s205 = smul.addr %s201, 60
          %s206 = sadd.s32 %s204, %s205
          %s207 = smul.addr %s206, 8
          %s208 = scalar_lea.vmem %s0, %s207
        $region36: #{tpu_custom_call.1} parent=31 // pred_fallthru
          _
      $region32: #{tpu_custom_call.1} parent=5 // pred_fallthru
        _
      %p209 = scmp.le.s32.totalorder 1, %s14
      %p210 = scmp.lt.s32.totalorder %s14, 5
      %p211 = pnand %p209, %p210
      %p212 = pneg %p211
      // Predicated region
      $region37: #{tpu_custom_call.1} parent=5 // pred_check
        _
      $region38: #{tpu_custom_call.1} parent=5 // pred_check_branch
        %214 = sbr.rel (%p211) target = $region40
      $region39: #{tpu_custom_call.1} parent=5 // pred_region
        %s215 = ssub.s32 %s14, 1
        %p216 = scmp.lt.s32.totalorder %s23, 1
        %s217 = scalar_select %p216, %s23, 1
        %p218 = scmp.lt.s32.totalorder %s24, 1
        %s219 = scalar_select %p218, %s24, 1
        %s220 = smul.addr %s219, 30
        %s221 = smul.addr %s217, 60
        %s222 = sadd.s32 %s220, %s221
        %s223 = smul.addr %s222, 8
        %s224 = scalar_lea.vmem %s0, %s223
        %p225 = pneg %p54
        %p226 = pneg %p51
        %p227 = pneg %p75
        %p228 = pneg %p72
        %p229 = pneg %p96
        %p230 = pneg %p93
        %p231 = pneg %p117
        %p232 = pneg %p114
        %p233 = pneg %p138
        %p234 = pneg %p135
        %p235 = pneg %p166
        %p236 = pneg %p163
        %s237 = sand.u32 %s153, 1
        %s238 = scalar_lea.sflag [#allocation3], %s237
        %s239 = sand.u32 %s153, 1
        %s240 = smul.addr %s239, 128
        %s241 = scalar_lea.vmem [#allocation2], %s240
        %p242 = scmp.lt.s32.totalorder %s23, 1
        %s243 = scalar_select %p242, %s23, 1
        %p244 = scmp.lt.s32.totalorder %s24, 1
        %s245 = scalar_select %p244, %s24, 1
        %s246 = smul.addr %s245, 30
        %s247 = smul.addr %s243, 60
        %s248 = sadd.s32 %s246, %s247
        %s249 = smul.addr %s248, 8
        %s250 = scalar_lea.vmem %s0, %s249
        %s251 = smul.u32 8, %s24
        %v252 = vld [vmem:[%s250] sm:$0xff]
        %v253 = vld [vmem:[%s250 + $0x8] sm:$0xff]
        %v254 = vld [vmem:[%s250 + $0x18] sm:$0xff]
        %v255 = vld [vmem:[%s250 + $0x20] sm:$0xff]
        %v256 = vld [vmem:[%s250 + $0x30] sm:$0xff]
        %v257 = vld [vmem:[%s250 + $0x38] sm:$0xff]
        %v258 = vld [vmem:[%s250 + $0x48] sm:$0xff]
        %v259 = vld [vmem:[%s250 + $0x50] sm:$0xff]
        %v260 = vld [vmem:[%s250 + $0x60] sm:$0xff]
        %v261 = vld [vmem:[%s250 + $0x68] sm:$0xff]
        %v262 = vld [vmem:[%s250 + $0x78] sm:$0xff]
        %v263 = vld [vmem:[%s250 + $0x80] sm:$0xff]
        %v264 = vld [vmem:[%s250 + $0x90] sm:$0xff]
        %v265 = vld [vmem:[%s250 + $0x98] sm:$0xff]
        %v266 = vld [vmem:[%s250 + $0xa8] sm:$0xff]
        %v267 = vld [vmem:[%s250 + $0xb0] sm:$0xff]
        %v268 = vld [vmem:[%s1] sm:$0x1]
        %v269 = vlaneseq
        %v270 = vshrl.u32 %v269, 7
        %v271 = vsub.s32 0, %v270
        %v272 = vrot.slane %v268, %v271
        %v273 = vmul.f32 %v252, %v272
        %v274 = vmul.f32 %v253, %v272
        %v275 = vmul.f32 %v254, %v272
        %v276 = vmul.f32 %v255, %v272
        %v277 = vmul.f32 %v256, %v272
        %v278 = vmul.f32 %v257, %v272
        %v279 = vmul.f32 %v258, %v272
        %v280 = vmul.f32 %v259, %v272
        %v281 = vmul.f32 %v260, %v272
        %v282 = vmul.f32 %v261, %v272
        %v283 = vmul.f32 %v262, %v272
        %v284 = vmul.f32 %v263, %v272
        %v285 = vmul.f32 %v264, %v272
        %v286 = vmul.f32 %v265, %v272
        %v287 = vmul.f32 %v266, %v272
        %v288 = vmul.f32 %v267, %v272
        %v289 = vadd.f32 %v273, 0.0
        %v290 = vadd.f32 %v274, 0.0
        %v291 = vadd.f32 %v275, 0.0
        %v292 = vadd.f32 %v276, 0.0
        %v293 = vadd.f32 %v277, 0.0
        %v294 = vadd.f32 %v278, 0.0
        %v295 = vadd.f32 %v279, 0.0
        %v296 = vadd.f32 %v280, 0.0
        %v297 = vadd.f32 %v281, 0.0
        %v298 = vadd.f32 %v282, 0.0
        %v299 = vadd.f32 %v283, 0.0
        %v300 = vadd.f32 %v284, 0.0
        %v301 = vadd.f32 %v285, 0.0
        %v302 = vadd.f32 %v286, 0.0
        %v303 = vadd.f32 %v287, 0.0
        %v304 = vadd.f32 %v288, 0.0
        %v305 = vld [vmem:[%s250 + $0x1] sm:$0xff]
        %v306 = vld [vmem:[%s250 + $0x9] sm:$0xff]
        %v307 = vld [vmem:[%s250 + $0x19] sm:$0xff]
        %v308 = vld [vmem:[%s250 + $0x21] sm:$0xff]
        %v309 = vld [vmem:[%s250 + $0x31] sm:$0xff]
        %v310 = vld [vmem:[%s250 + $0x39] sm:$0xff]
        %v311 = vld [vmem:[%s250 + $0x49] sm:$0xff]
        %v312 = vld [vmem:[%s250 + $0x51] sm:$0xff]
        %v313 = vld [vmem:[%s250 + $0x61] sm:$0xff]
        %v314 = vld [vmem:[%s250 + $0x69] sm:$0xff]
        %v315 = vld [vmem:[%s250 + $0x79] sm:$0xff]
        %v316 = vld [vmem:[%s250 + $0x81] sm:$0xff]
        %v317 = vld [vmem:[%s250 + $0x91] sm:$0xff]
        %v318 = vld [vmem:[%s250 + $0x99] sm:$0xff]
        %v319 = vld [vmem:[%s250 + $0xa9] sm:$0xff]
        %v320 = vld [vmem:[%s250 + $0xb1] sm:$0xff]
        %v321 = vld [vmem:[%s1 + $0x1] sm:$0x1]
        %v322 = vlaneseq
        %v323 = vshrl.u32 %v322, 7
        %v324 = vsub.s32 0, %v323
        %v325 = vrot.slane %v321, %v324
        %v326 = vmul.f32 %v305, %v325
        %v327 = vmul.f32 %v306, %v325
        %v328 = vmul.f32 %v307, %v325
        %v329 = vmul.f32 %v308, %v325
        %v330 = vmul.f32 %v309, %v325
        %v331 = vmul.f32 %v310, %v325
        %v332 = vmul.f32 %v311, %v325
        %v333 = vmul.f32 %v312, %v325
        %v334 = vmul.f32 %v313, %v325
        %v335 = vmul.f32 %v314, %v325
        %v336 = vmul.f32 %v315, %v325
        %v337 = vmul.f32 %v316, %v325
        %v338 = vmul.f32 %v317, %v325
        %v339 = vmul.f32 %v318, %v325
        %v340 = vmul.f32 %v319, %v325
        %v341 = vmul.f32 %v320, %v325
        %v342 = vadd.f32 %v289, %v326
        %v343 = vadd.f32 %v290, %v327
        %v344 = vadd.f32 %v291, %v328
        %v345 = vadd.f32 %v292, %v329
        %v346 = vadd.f32 %v293, %v330
        %v347 = vadd.f32 %v294, %v331
        %v348 = vadd.f32 %v295, %v332
        %v349 = vadd.f32 %v296, %v333
        %v350 = vadd.f32 %v297, %v334
        %v351 = vadd.f32 %v298, %v335
        %v352 = vadd.f32 %v299, %v336
        %v353 = vadd.f32 %v300, %v337
        %v354 = vadd.f32 %v301, %v338
        %v355 = vadd.f32 %v302, %v339
        %v356 = vadd.f32 %v303, %v340
        %v357 = vadd.f32 %v304, %v341
        %v358 = vld [vmem:[%s250 + $0x2] sm:$0xff]
        %v359 = vld [vmem:[%s250 + $0xa] sm:$0xff]
        %v360 = vld [vmem:[%s250 + $0x1a] sm:$0xff]
        %v361 = vld [vmem:[%s250 + $0x22] sm:$0xff]
        %v362 = vld [vmem:[%s250 + $0x32] sm:$0xff]
        %v363 = vld [vmem:[%s250 + $0x3a] sm:$0xff]
        %v364 = vld [vmem:[%s250 + $0x4a] sm:$0xff]
        %v365 = vld [vmem:[%s250 + $0x52] sm:$0xff]
        %v366 = vld [vmem:[%s250 + $0x62] sm:$0xff]
        %v367 = vld [vmem:[%s250 + $0x6a] sm:$0xff]
        %v368 = vld [vmem:[%s250 + $0x7a] sm:$0xff]
        %v369 = vld [vmem:[%s250 + $0x82] sm:$0xff]
        %v370 = vld [vmem:[%s250 + $0x92] sm:$0xff]
        %v371 = vld [vmem:[%s250 + $0x9a] sm:$0xff]
        %v372 = vld [vmem:[%s250 + $0xaa] sm:$0xff]
        %v373 = vld [vmem:[%s250 + $0xb2] sm:$0xff]
        %v374 = vld [vmem:[%s1 + $0x2] sm:$0x1]
        %v375 = vlaneseq
        %v376 = vshrl.u32 %v375, 7
        %v377 = vsub.s32 0, %v376
        %v378 = vrot.slane %v374, %v377
        %v379 = vmul.f32 %v358, %v378
        %v380 = vmul.f32 %v359, %v378
        %v381 = vmul.f32 %v360, %v378
        %v382 = vmul.f32 %v361, %v378
        %v383 = vmul.f32 %v362, %v378
        %v384 = vmul.f32 %v363, %v378
        %v385 = vmul.f32 %v364, %v378
        %v386 = vmul.f32 %v365, %v378
        %v387 = vmul.f32 %v366, %v378
        %v388 = vmul.f32 %v367, %v378
        %v389 = vmul.f32 %v368, %v378
        %v390 = vmul.f32 %v369, %v378
        %v391 = vmul.f32 %v370, %v378
        %v392 = vmul.f32 %v371, %v378
        %v393 = vmul.f32 %v372, %v378
        %v394 = vmul.f32 %v373, %v378
        %v395 = vadd.f32 %v342, %v379
        %v396 = vadd.f32 %v343, %v380
        %v397 = vadd.f32 %v344, %v381
        %v398 = vadd.f32 %v345, %v382
        %v399 = vadd.f32 %v346, %v383
        %v400 = vadd.f32 %v347, %v384
        %v401 = vadd.f32 %v348, %v385
        %v402 = vadd.f32 %v349, %v386
        %v403 = vadd.f32 %v350, %v387
        %v404 = vadd.f32 %v351, %v388
        %v405 = vadd.f32 %v352, %v389
        %v406 = vadd.f32 %v353, %v390
        %v407 = vadd.f32 %v354, %v391
        %v408 = vadd.f32 %v355, %v392
        %v409 = vadd.f32 %v356, %v393
        %v410 = vadd.f32 %v357, %v394
        %s411 = scalar_lea.vmem %s250, 24
        %v412 = vld [vmem:[%s411] sm:$0xff]
        %v413 = vld [vmem:[%s411 + $0x8] sm:$0xff]
        %v414 = vld [vmem:[%s411 + $0x18] sm:$0xff]
        %v415 = vld [vmem:[%s411 + $0x20] sm:$0xff]
        %v416 = vld [vmem:[%s411 + $0x30] sm:$0xff]
        %v417 = vld [vmem:[%s411 + $0x38] sm:$0xff]
        %v418 = vld [vmem:[%s411 + $0x48] sm:$0xff]
        %v419 = vld [vmem:[%s411 + $0x50] sm:$0xff]
        %v420 = vld [vmem:[%s411 + $0x60] sm:$0xff]
        %v421 = vld [vmem:[%s411 + $0x68] sm:$0xff]
        %v422 = vld [vmem:[%s411 + $0x78] sm:$0xff]
        %v423 = vld [vmem:[%s411 + $0x80] sm:$0xff]
        %v424 = vld [vmem:[%s411 + $0x90] sm:$0xff]
        %v425 = vld [vmem:[%s411 + $0x98] sm:$0xff]
        %v426 = vld [vmem:[%s411 + $0xa8] sm:$0xff]
        %v427 = vld [vmem:[%s411 + $0xb0] sm:$0xff]
        %s428 = scalar_lea.vmem %s1, 4
        %v429 = vld [vmem:[%s428] sm:$0x1]
        %v430 = vlaneseq
        %v431 = vshrl.u32 %v430, 7
        %v432 = vsub.s32 0, %v431
        %v433 = vrot.slane %v429, %v432
        %v434 = vmul.f32 %v412, %v433
        %v435 = vmul.f32 %v413, %v433
        %v436 = vmul.f32 %v414, %v433
        %v437 = vmul.f32 %v415, %v433
        %v438 = vmul.f32 %v416, %v433
        %v439 = vmul.f32 %v417, %v433
        %v440 = vmul.f32 %v418, %v433
        %v441 = vmul.f32 %v419, %v433
        %v442 = vmul.f32 %v420, %v433
        %v443 = vmul.f32 %v421, %v433
        %v444 = vmul.f32 %v422, %v433
        %v445 = vmul.f32 %v423, %v433
        %v446 = vmul.f32 %v424, %v433
        %v447 = vmul.f32 %v425, %v433
        %v448 = vmul.f32 %v426, %v433
        %v449 = vmul.f32 %v427, %v433
        %v450 = vadd.f32 %v395, %v434
        %v451 = vadd.f32 %v396, %v435
        %v452 = vadd.f32 %v397, %v436
        %v453 = vadd.f32 %v398, %v437
        %v454 = vadd.f32 %v399, %v438
        %v455 = vadd.f32 %v400, %v439
        %v456 = vadd.f32 %v401, %v440
        %v457 = vadd.f32 %v402, %v441
        %v458 = vadd.f32 %v403, %v442
        %v459 = vadd.f32 %v404, %v443
        %v460 = vadd.f32 %v405, %v444
        %v461 = vadd.f32 %v406, %v445
        %v462 = vadd.f32 %v407, %v446
        %v463 = vadd.f32 %v408, %v447
        %v464 = vadd.f32 %v409, %v448
        %v465 = vadd.f32 %v410, %v449
        %v466 = vld [vmem:[%s411 + $0x1] sm:$0xff]
        %v467 = vld [vmem:[%s411 + $0x9] sm:$0xff]
        %v468 = vld [vmem:[%s411 + $0x19] sm:$0xff]
        %v469 = vld [vmem:[%s411 + $0x21] sm:$0xff]
        %v470 = vld [vmem:[%s411 + $0x31] sm:$0xff]
        %v471 = vld [vmem:[%s411 + $0x39] sm:$0xff]
        %v472 = vld [vmem:[%s411 + $0x49] sm:$0xff]
        %v473 = vld [vmem:[%s411 + $0x51] sm:$0xff]
        %v474 = vld [vmem:[%s411 + $0x61] sm:$0xff]
        %v475 = vld [vmem:[%s411 + $0x69] sm:$0xff]
        %v476 = vld [vmem:[%s411 + $0x79] sm:$0xff]
        %v477 = vld [vmem:[%s411 + $0x81] sm:$0xff]
        %v478 = vld [vmem:[%s411 + $0x91] sm:$0xff]
        %v479 = vld [vmem:[%s411 + $0x99] sm:$0xff]
        %v480 = vld [vmem:[%s411 + $0xa9] sm:$0xff]
        %v481 = vld [vmem:[%s411 + $0xb1] sm:$0xff]
        %v482 = vld [vmem:[%s428 + $0x1] sm:$0x1]
        %v483 = vlaneseq
        %v484 = vshrl.u32 %v483, 7
        %v485 = vsub.s32 0, %v484
        %v486 = vrot.slane %v482, %v485
        %v487 = vmul.f32 %v466, %v486
        %v488 = vmul.f32 %v467, %v486
        %v489 = vmul.f32 %v468, %v486
        %v490 = vmul.f32 %v469, %v486
        %v491 = vmul.f32 %v470, %v486
        %v492 = vmul.f32 %v471, %v486
        %v493 = vmul.f32 %v472, %v486
        %v494 = vmul.f32 %v473, %v486
        %v495 = vmul.f32 %v474, %v486
        %v496 = vmul.f32 %v475, %v486
        %v497 = vmul.f32 %v476, %v486
        %v498 = vmul.f32 %v477, %v486
        %v499 = vmul.f32 %v478, %v486
        %v500 = vmul.f32 %v479, %v486
        %v501 = vmul.f32 %v480, %v486
        %v502 = vmul.f32 %v481, %v486
        %v503 = vadd.f32 %v450, %v487
        %v504 = vadd.f32 %v451, %v488
        %v505 = vadd.f32 %v452, %v489
        %v506 = vadd.f32 %v453, %v490
        %v507 = vadd.f32 %v454, %v491
        %v508 = vadd.f32 %v455, %v492
        %v509 = vadd.f32 %v456, %v493
        %v510 = vadd.f32 %v457, %v494
        %v511 = vadd.f32 %v458, %v495
        %v512 = vadd.f32 %v459, %v496
        %v513 = vadd.f32 %v460, %v497
        %v514 = vadd.f32 %v461, %v498
        %v515 = vadd.f32 %v462, %v499
        %v516 = vadd.f32 %v463, %v500
        %v517 = vadd.f32 %v464, %v501
        %v518 = vadd.f32 %v465, %v502
        %v519 = vld [vmem:[%s411 + $0x2] sm:$0xff]
        %v520 = vld [vmem:[%s411 + $0xa] sm:$0xff]
        %v521 = vld [vmem:[%s411 + $0x1a] sm:$0xff]
        %v522 = vld [vmem:[%s411 + $0x22] sm:$0xff]
        %v523 = vld [vmem:[%s411 + $0x32] sm:$0xff]
        %v524 = vld [vmem:[%s411 + $0x3a] sm:$0xff]
        %v525 = vld [vmem:[%s411 + $0x4a] sm:$0xff]
        %v526 = vld [vmem:[%s411 + $0x52] sm:$0xff]
        %v527 = vld [vmem:[%s411 + $0x62] sm:$0xff]
        %v528 = vld [vmem:[%s411 + $0x6a] sm:$0xff]
        %v529 = vld [vmem:[%s411 + $0x7a] sm:$0xff]
        %v530 = vld [vmem:[%s411 + $0x82] sm:$0xff]
        %v531 = vld [vmem:[%s411 + $0x92] sm:$0xff]
        %v532 = vld [vmem:[%s411 + $0x9a] sm:$0xff]
        %v533 = vld [vmem:[%s411 + $0xaa] sm:$0xff]
        %v534 = vld [vmem:[%s411 + $0xb2] sm:$0xff]
        %v535 = vld [vmem:[%s428 + $0x2] sm:$0x1]
        %v536 = vlaneseq
        %v537 = vshrl.u32 %v536, 7
        %v538 = vsub.s32 0, %v537
        %v539 = vrot.slane %v535, %v538
        %v540 = vmul.f32 %v519, %v539
        %v541 = vmul.f32 %v520, %v539
        %v542 = vmul.f32 %v521, %v539
        %v543 = vmul.f32 %v522, %v539
        %v544 = vmul.f32 %v523, %v539
        %v545 = vmul.f32 %v524, %v539
        %v546 = vmul.f32 %v525, %v539
        %v547 = vmul.f32 %v526, %v539
        %v548 = vmul.f32 %v527, %v539
        %v549 = vmul.f32 %v528, %v539
        %v550 = vmul.f32 %v529, %v539
        %v551 = vmul.f32 %v530, %v539
        %v552 = vmul.f32 %v531, %v539
        %v553 = vmul.f32 %v532, %v539
        %v554 = vmul.f32 %v533, %v539
        %v555 = vmul.f32 %v534, %v539
        %v556 = vadd.f32 %v503, %v540
        %v557 = vadd.f32 %v504, %v541
        %v558 = vadd.f32 %v505, %v542
        %v559 = vadd.f32 %v506, %v543
        %v560 = vadd.f32 %v507, %v544
        %v561 = vadd.f32 %v508, %v545
        %v562 = vadd.f32 %v509, %v546
        %v563 = vadd.f32 %v510, %v547
        %v564 = vadd.f32 %v511, %v548
        %v565 = vadd.f32 %v512, %v549
        %v566 = vadd.f32 %v513, %v550
        %v567 = vadd.f32 %v514, %v551
        %v568 = vadd.f32 %v515, %v552
        %v569 = vadd.f32 %v516, %v553
        %v570 = vadd.f32 %v517, %v554
        %v571 = vadd.f32 %v518, %v555
        %s572 = scalar_lea.vmem %s250, 48
        %v573 = vld [vmem:[%s572] sm:$0xff]
        %v574 = vld [vmem:[%s572 + $0x8] sm:$0xff]
        %v575 = vld [vmem:[%s572 + $0x18] sm:$0xff]
        %v576 = vld [vmem:[%s572 + $0x20] sm:$0xff]
        %v577 = vld [vmem:[%s572 + $0x30] sm:$0xff]
        %v578 = vld [vmem:[%s572 + $0x38] sm:$0xff]
        %v579 = vld [vmem:[%s572 + $0x48] sm:$0xff]
        %v580 = vld [vmem:[%s572 + $0x50] sm:$0xff]
        %v581 = vld [vmem:[%s572 + $0x60] sm:$0xff]
        %v582 = vld [vmem:[%s572 + $0x68] sm:$0xff]
        %v583 = vld [vmem:[%s572 + $0x78] sm:$0xff]
        %v584 = vld [vmem:[%s572 + $0x80] sm:$0xff]
        %v585 = vld [vmem:[%s572 + $0x90] sm:$0xff]
        %v586 = vld [vmem:[%s572 + $0x98] sm:$0xff]
        %v587 = vld [vmem:[%s572 + $0xa8] sm:$0xff]
        %v588 = vld [vmem:[%s572 + $0xb0] sm:$0xff]
        %s589 = scalar_lea.vmem %s1, 8
        %v590 = vld [vmem:[%s589] sm:$0x1]
        %v591 = vlaneseq
        %v592 = vshrl.u32 %v591, 7
        %v593 = vsub.s32 0, %v592
        %v594 = vrot.slane %v590, %v593
        %v595 = vmul.f32 %v573, %v594
        %v596 = vmul.f32 %v574, %v594
        %v597 = vmul.f32 %v575, %v594
        %v598 = vmul.f32 %v576, %v594
        %v599 = vmul.f32 %v577, %v594
        %v600 = vmul.f32 %v578, %v594
        %v601 = vmul.f32 %v579, %v594
        %v602 = vmul.f32 %v580, %v594
        %v603 = vmul.f32 %v581, %v594
        %v604 = vmul.f32 %v582, %v594
        %v605 = vmul.f32 %v583, %v594
        %v606 = vmul.f32 %v584, %v594
        %v607 = vmul.f32 %v585, %v594
        %v608 = vmul.f32 %v586, %v594
        %v609 = vmul.f32 %v587, %v594
        %v610 = vmul.f32 %v588, %v594
        %v611 = vadd.f32 %v556, %v595
        %v612 = vadd.f32 %v557, %v596
        %v613 = vadd.f32 %v558, %v597
        %v614 = vadd.f32 %v559, %v598
        %v615 = vadd.f32 %v560, %v599
        %v616 = vadd.f32 %v561, %v600
        %v617 = vadd.f32 %v562, %v601
        %v618 = vadd.f32 %v563, %v602
        %v619 = vadd.f32 %v564, %v603
        %v620 = vadd.f32 %v565, %v604
        %v621 = vadd.f32 %v566, %v605
        %v622 = vadd.f32 %v567, %v606
        %v623 = vadd.f32 %v568, %v607
        %v624 = vadd.f32 %v569, %v608
        %v625 = vadd.f32 %v570, %v609
        %v626 = vadd.f32 %v571, %v610
        %v627 = vld [vmem:[%s572 + $0x1] sm:$0xff]
        %v628 = vld [vmem:[%s572 + $0x9] sm:$0xff]
        %v629 = vld [vmem:[%s572 + $0x19] sm:$0xff]
        %v630 = vld [vmem:[%s572 + $0x21] sm:$0xff]
        %v631 = vld [vmem:[%s572 + $0x31] sm:$0xff]
        %v632 = vld [vmem:[%s572 + $0x39] sm:$0xff]
        %v633 = vld [vmem:[%s572 + $0x49] sm:$0xff]
        %v634 = vld [vmem:[%s572 + $0x51] sm:$0xff]
        %v635 = vld [vmem:[%s572 + $0x61] sm:$0xff]
        %v636 = vld [vmem:[%s572 + $0x69] sm:$0xff]
        %v637 = vld [vmem:[%s572 + $0x79] sm:$0xff]
        %v638 = vld [vmem:[%s572 + $0x81] sm:$0xff]
        %v639 = vld [vmem:[%s572 + $0x91] sm:$0xff]
        %v640 = vld [vmem:[%s572 + $0x99] sm:$0xff]
        %v641 = vld [vmem:[%s572 + $0xa9] sm:$0xff]
        %v642 = vld [vmem:[%s572 + $0xb1] sm:$0xff]
        %v643 = vld [vmem:[%s589 + $0x1] sm:$0x1]
        %v644 = vlaneseq
        %v645 = vshrl.u32 %v644, 7
        %v646 = vsub.s32 0, %v645
        %v647 = vrot.slane %v643, %v646
        %v648 = vmul.f32 %v627, %v647
        %v649 = vmul.f32 %v628, %v647
        %v650 = vmul.f32 %v629, %v647
        %v651 = vmul.f32 %v630, %v647
        %v652 = vmul.f32 %v631, %v647
        %v653 = vmul.f32 %v632, %v647
        %v654 = vmul.f32 %v633, %v647
        %v655 = vmul.f32 %v634, %v647
        %v656 = vmul.f32 %v635, %v647
        %v657 = vmul.f32 %v636, %v647
        %v658 = vmul.f32 %v637, %v647
        %v659 = vmul.f32 %v638, %v647
        %v660 = vmul.f32 %v639, %v647
        %v661 = vmul.f32 %v640, %v647
        %v662 = vmul.f32 %v641, %v647
        %v663 = vmul.f32 %v642, %v647
        %v664 = vadd.f32 %v611, %v648
        %v665 = vadd.f32 %v612, %v649
        %v666 = vadd.f32 %v613, %v650
        %v667 = vadd.f32 %v614, %v651
        %v668 = vadd.f32 %v615, %v652
        %v669 = vadd.f32 %v616, %v653
        %v670 = vadd.f32 %v617, %v654
        %v671 = vadd.f32 %v618, %v655
        %v672 = vadd.f32 %v619, %v656
        %v673 = vadd.f32 %v620, %v657
        %v674 = vadd.f32 %v621, %v658
        %v675 = vadd.f32 %v622, %v659
        %v676 = vadd.f32 %v623, %v660
        %v677 = vadd.f32 %v624, %v661
        %v678 = vadd.f32 %v625, %v662
        %v679 = vadd.f32 %v626, %v663
        %v680 = vld [vmem:[%s572 + $0x2] sm:$0xff]
        %v681 = vld [vmem:[%s572 + $0xa] sm:$0xff]
        %v682 = vld [vmem:[%s572 + $0x1a] sm:$0xff]
        %v683 = vld [vmem:[%s572 + $0x22] sm:$0xff]
        %v684 = vld [vmem:[%s572 + $0x32] sm:$0xff]
        %v685 = vld [vmem:[%s572 + $0x3a] sm:$0xff]
        %v686 = vld [vmem:[%s572 + $0x4a] sm:$0xff]
        %v687 = vld [vmem:[%s572 + $0x52] sm:$0xff]
        %v688 = vld [vmem:[%s572 + $0x62] sm:$0xff]
        %v689 = vld [vmem:[%s572 + $0x6a] sm:$0xff]
        %v690 = vld [vmem:[%s572 + $0x7a] sm:$0xff]
        %v691 = vld [vmem:[%s572 + $0x82] sm:$0xff]
        %v692 = vld [vmem:[%s572 + $0x92] sm:$0xff]
        %v693 = vld [vmem:[%s572 + $0x9a] sm:$0xff]
        %v694 = vld [vmem:[%s572 + $0xaa] sm:$0xff]
        %v695 = vld [vmem:[%s572 + $0xb2] sm:$0xff]
        %v696 = vld [vmem:[%s589 + $0x2] sm:$0x1]
        %v697 = vlaneseq
        %v698 = vshrl.u32 %v697, 7
        %v699 = vsub.s32 0, %v698
        %v700 = vrot.slane %v696, %v699
        %v701 = vmul.f32 %v680, %v700
        %v702 = vmul.f32 %v681, %v700
        %v703 = vmul.f32 %v682, %v700
        %v704 = vmul.f32 %v683, %v700
        %v705 = vmul.f32 %v684, %v700
        %v706 = vmul.f32 %v685, %v700
        %v707 = vmul.f32 %v686, %v700
        %v708 = vmul.f32 %v687, %v700
        %v709 = vmul.f32 %v688, %v700
        %v710 = vmul.f32 %v689, %v700
        %v711 = vmul.f32 %v690, %v700
        %v712 = vmul.f32 %v691, %v700
        %v713 = vmul.f32 %v692, %v700
        %v714 = vmul.f32 %v693, %v700
        %v715 = vmul.f32 %v694, %v700
        %v716 = vmul.f32 %v695, %v700
        %v717 = vadd.f32 %v664, %v701
        %v718 = vadd.f32 %v665, %v702
        %v719 = vadd.f32 %v666, %v703
        %v720 = vadd.f32 %v667, %v704
        %v721 = vadd.f32 %v668, %v705
        %v722 = vadd.f32 %v669, %v706
        %v723 = vadd.f32 %v670, %v707
        %v724 = vadd.f32 %v671, %v708
        %v725 = vadd.f32 %v672, %v709
        %v726 = vadd.f32 %v673, %v710
        %v727 = vadd.f32 %v674, %v711
        %v728 = vadd.f32 %v675, %v712
        %v729 = vadd.f32 %v676, %v713
        %v730 = vadd.f32 %v677, %v714
        %v731 = vadd.f32 %v678, %v715
        %v732 = vadd.f32 %v679, %v716
        %v733 = vld [vmem:[%s2] sm:$0x1]
        %v735 = vlaneseq
        %v736 = vshrl.u32 %v735, 7
        %v737 = vsub.s32 0, %v736
        %v738 = vrot.slane %v733, %v737
        %v740 = vadd.f32 %v717, %v738
        %v741 = vadd.f32 %v718, %v738
        %v742 = vadd.f32 %v719, %v738
        %v743 = vadd.f32 %v720, %v738
        %v744 = vadd.f32 %v721, %v738
        %v745 = vadd.f32 %v722, %v738
        %v746 = vadd.f32 %v723, %v738
        %v747 = vadd.f32 %v724, %v738
        %v748 = vadd.f32 %v725, %v738
        %v749 = vadd.f32 %v726, %v738
        %v750 = vadd.f32 %v727, %v738
        %v751 = vadd.f32 %v728, %v738
        %v752 = vadd.f32 %v729, %v738
        %v753 = vadd.f32 %v730, %v738
        %v754 = vadd.f32 %v731, %v738
        %v755 = vadd.f32 %v732, %v738
        %v756 = vmax.f32 %v740, 0.0
        %v757 = vmax.f32 %v741, 0.0
        %v758 = vmax.f32 %v742, 0.0
        %v759 = vmax.f32 %v743, 0.0
        %v760 = vmax.f32 %v744, 0.0
        %v761 = vmax.f32 %v745, 0.0
        %v762 = vmax.f32 %v746, 0.0
        %v763 = vmax.f32 %v747, 0.0
        %v764 = vmax.f32 %v748, 0.0
        %v765 = vmax.f32 %v749, 0.0
        %v766 = vmax.f32 %v750, 0.0
        %v767 = vmax.f32 %v751, 0.0
        %v768 = vmax.f32 %v752, 0.0
        %v769 = vmax.f32 %v753, 0.0
        %v770 = vmax.f32 %v754, 0.0
        %v771 = vmax.f32 %v755, 0.0
        %v772 = vld [vmem:[%s3] sm:$0xff]
        %v773 = vld [vmem:[%s3 + $0x8] sm:$0xff]
        %v774 = vld [vmem:[%s3 + $0x10] sm:$0xff]
        %v775 = vld [vmem:[%s3 + $0x18] sm:$0xff]
        %v776 = vld [vmem:[%s3 + $0x20] sm:$0xff]
        %v777 = vld [vmem:[%s3 + $0x28] sm:$0xff]
        %v778 = vld [vmem:[%s3 + $0x30] sm:$0xff]
        %v779 = vld [vmem:[%s3 + $0x38] sm:$0xff]
        %v780 = vld [vmem:[%s3 + $0x40] sm:$0xff]
        %v781 = vld [vmem:[%s3 + $0x48] sm:$0xff]
        %v782 = vld [vmem:[%s3 + $0x50] sm:$0xff]
        %v783 = vld [vmem:[%s3 + $0x58] sm:$0xff]
        %v784 = vld [vmem:[%s3 + $0x60] sm:$0xff]
        %v785 = vld [vmem:[%s3 + $0x68] sm:$0xff]
        %v786 = vld [vmem:[%s3 + $0x70] sm:$0xff]
        %v787 = vld [vmem:[%s3 + $0x78] sm:$0xff]
        %v788 = vld [vmem:[%s4] sm:$0x1]
        %v790 = vlaneseq
        %v791 = vshrl.u32 %v790, 7
        %v792 = vsub.s32 0, %v791
        %v793 = vrot.slane %v788, %v792
        %795 = vmatprep.subr.mxu0 0.0
        %796 = vmatpush1.msra.mxu0 %v787
        %797 = vmatprep.subr.mxu0 0.0
        %798 = vmatpush1.msra.mxu0 %v786
        %799 = vmatprep.subr.mxu0 0.0
        %800 = vmatpush1.msra.mxu0 %v785
        %801 = vmatprep.subr.mxu0 0.0
        %802 = vmatpush1.msra.mxu0 %v784
        %803 = vmatprep.subr.mxu0 0.0
        %804 = vmatpush1.msra.mxu0 %v783
        %805 = vmatprep.subr.mxu0 0.0
        %806 = vmatpush1.msra.mxu0 %v782
        %807 = vmatprep.subr.mxu0 0.0
        %808 = vmatpush1.msra.mxu0 %v781
        %809 = vmatprep.subr.mxu0 0.0
        %810 = vmatpush1.msra.mxu0 %v780
        %811 = vmatprep.subr.mxu0 0.0
        %812 = vmatpush1.msra.mxu0 %v779
        %813 = vmatprep.subr.mxu0 0.0
        %814 = vmatpush1.msra.mxu0 %v778
        %815 = vmatprep.subr.mxu0 0.0
        %816 = vmatpush1.msra.mxu0 %v777
        %817 = vmatprep.subr.mxu0 0.0
        %818 = vmatpush1.msra.mxu0 %v776
        %819 = vmatprep.subr.mxu0 0.0
        %820 = vmatpush1.msra.mxu0 %v775
        %821 = vmatprep.subr.mxu0 0.0
        %822 = vmatpush1.msra.mxu0 %v774
        %823 = vmatprep.subr.mxu0 0.0
        %824 = vmatpush1.msra.mxu0 %v773
        %825 = vmatprep.subr.mxu0 0.0
        %826 = vmatpush1.msra.mxu0 %v772
        %827 = vmatprep.subr.mxu0 0.0
        %828 = vmatpush2.msra.mxu0 0.0
        %829 = vmatprep.subr.mxu0 0.0
        %830 = vmatpush2.msra.mxu0 0.0
        %831 = vmatprep.subr.mxu0 0.0
        %832 = vmatpush2.msra.mxu0 0.0
        %833 = vmatprep.subr.mxu0 0.0
        %834 = vmatpush2.msra.mxu0 0.0
        %835 = vmatprep.subr.mxu0 0.0
        %836 = vmatpush2.msra.mxu0 0.0
        %837 = vmatprep.subr.mxu0 0.0
        %838 = vmatpush2.msra.mxu0 0.0
        %839 = vmatprep.subr.mxu0 0.0
        %840 = vmatpush2.msra.mxu0 0.0
        %841 = vmatprep.subr.mxu0 0.0
        %842 = vmatpush2.msra.mxu0 0.0
        %843 = vmatprep.subr.mxu0 0.0
        %844 = vmatpush2.msra.mxu0 0.0
        %845 = vmatprep.subr.mxu0 0.0
        %846 = vmatpush2.msra.mxu0 0.0
        %847 = vmatprep.subr.mxu0 0.0
        %848 = vmatpush2.msra.mxu0 0.0
        %849 = vmatprep.subr.mxu0 0.0
        %850 = vmatpush2.msra.mxu0 0.0
        %851 = vmatprep.subr.mxu0 0.0
        %852 = vmatpush2.msra.mxu0 0.0
        %853 = vmatprep.subr.mxu0 0.0
        %854 = vmatpush2.msra.mxu0 0.0
        %855 = vmatprep.subr.mxu0 0.0
        %856 = vmatpush2.msra.mxu0 0.0
        %857 = vmatprep.subr.mxu0 0.0
        %858 = vmatpush2.msra.mxu0 0.0
        %859 = vmatprep.mubr.f32.mxu0 0.0
        %860 = vmatmul.mubr.f32.gmra.mxu0 %v756
        %v861 = vpop.f32.mrf.mxu0
        %v862 = vadd.f32 %v793, %v861
        %v863 = vpop.f32.mrf.mxu0
        %864 = vmatprep.mubr.f32.mxu0 0.0
        %865 = vmatmul.mubr.f32.gmra.mxu0 %v757
        %v866 = vpop.f32.mrf.mxu0
        %v867 = vadd.f32 %v793, %v866
        %v868 = vpop.f32.mrf.mxu0
        %869 = vmatprep.mubr.f32.mxu0 0.0
        %870 = vmatmul.mubr.f32.gmra.mxu0 %v758
        %v871 = vpop.f32.mrf.mxu0
        %v872 = vadd.f32 %v793, %v871
        %v873 = vpop.f32.mrf.mxu0
        %874 = vmatprep.mubr.f32.mxu0 0.0
        %875 = vmatmul.mubr.f32.gmra.mxu0 %v759
        %v876 = vpop.f32.mrf.mxu0
        %v877 = vadd.f32 %v793, %v876
        %v878 = vpop.f32.mrf.mxu0
        %879 = vmatprep.mubr.f32.mxu0 0.0
        %880 = vmatmul.mubr.f32.gmra.mxu0 %v760
        %v881 = vpop.f32.mrf.mxu0
        %v882 = vadd.f32 %v793, %v881
        %v883 = vpop.f32.mrf.mxu0
        %884 = vmatprep.mubr.f32.mxu0 0.0
        %885 = vmatmul.mubr.f32.gmra.mxu0 %v761
        %v886 = vpop.f32.mrf.mxu0
        %v887 = vadd.f32 %v793, %v886
        %v888 = vpop.f32.mrf.mxu0
        %889 = vmatprep.mubr.f32.mxu0 0.0
        %890 = vmatmul.mubr.f32.gmra.mxu0 %v762
        %v891 = vpop.f32.mrf.mxu0
        %v892 = vadd.f32 %v793, %v891
        %v893 = vpop.f32.mrf.mxu0
        %894 = vmatprep.mubr.f32.mxu0 0.0
        %895 = vmatmul.mubr.f32.gmra.mxu0 %v763
        %v896 = vpop.f32.mrf.mxu0
        %v897 = vadd.f32 %v793, %v896
        %v898 = vpop.f32.mrf.mxu0
        %899 = vmatprep.mubr.f32.mxu0 0.0
        %900 = vmatmul.mubr.f32.gmra.mxu0 %v764
        %v901 = vpop.f32.mrf.mxu0
        %v902 = vadd.f32 %v793, %v901
        %v903 = vpop.f32.mrf.mxu0
        %904 = vmatprep.mubr.f32.mxu0 0.0
        %905 = vmatmul.mubr.f32.gmra.mxu0 %v765
        %v906 = vpop.f32.mrf.mxu0
        %v907 = vadd.f32 %v793, %v906
        %v908 = vpop.f32.mrf.mxu0
        %909 = vmatprep.mubr.f32.mxu0 0.0
        %910 = vmatmul.mubr.f32.gmra.mxu0 %v766
        %v911 = vpop.f32.mrf.mxu0
        %v912 = vadd.f32 %v793, %v911
        %v913 = vpop.f32.mrf.mxu0
        %914 = vmatprep.mubr.f32.mxu0 0.0
        %915 = vmatmul.mubr.f32.gmra.mxu0 %v767
        %v916 = vpop.f32.mrf.mxu0
        %v917 = vadd.f32 %v793, %v916
        %v918 = vpop.f32.mrf.mxu0
        %919 = vmatprep.mubr.f32.mxu0 0.0
        %920 = vmatmul.mubr.f32.gmra.mxu0 %v768
        %v921 = vpop.f32.mrf.mxu0
        %v922 = vadd.f32 %v793, %v921
        %v923 = vpop.f32.mrf.mxu0
        %924 = vmatprep.mubr.f32.mxu0 0.0
        %925 = vmatmul.mubr.f32.gmra.mxu0 %v769
        %v926 = vpop.f32.mrf.mxu0
        %v927 = vadd.f32 %v793, %v926
        %v928 = vpop.f32.mrf.mxu0
        %929 = vmatprep.mubr.f32.mxu0 0.0
        %930 = vmatmul.mubr.f32.gmra.mxu0 %v770
        %v931 = vpop.f32.mrf.mxu0
        %v932 = vadd.f32 %v793, %v931
        %v933 = vpop.f32.mrf.mxu0
        %934 = vmatprep.mubr.f32.mxu0 0.0
        %935 = vmatmul.mubr.f32.gmra.mxu0 %v771
        %v936 = vpop.f32.mrf.mxu0
        %v937 = vadd.f32 %v793, %v936
        %v938 = vpop.f32.mrf.mxu0
        %939 = vdwg.mxu0
        %v940 = vmax.f32 %v862, 0.0
        %v941 = vmax.f32 %v867, 0.0
        %v942 = vmax.f32 %v872, 0.0
        %v943 = vmax.f32 %v877, 0.0
        %v944 = vmax.f32 %v882, 0.0
        %v945 = vmax.f32 %v887, 0.0
        %v946 = vmax.f32 %v892, 0.0
        %v947 = vmax.f32 %v897, 0.0
        %v948 = vmax.f32 %v902, 0.0
        %v949 = vmax.f32 %v907, 0.0
        %v950 = vmax.f32 %v912, 0.0
        %v951 = vmax.f32 %v917, 0.0
        %v952 = vmax.f32 %v922, 0.0
        %v953 = vmax.f32 %v927, 0.0
        %v954 = vmax.f32 %v932, 0.0
        %v955 = vmax.f32 %v937, 0.0
        %956 = vst [vmem:[%s241] sm:$0xff] %v940
        %957 = vst [vmem:[%s241 + $0x8] sm:$0xff] %v941
        %958 = vst [vmem:[%s241 + $0x10] sm:$0xff] %v942
        %959 = vst [vmem:[%s241 + $0x18] sm:$0xff] %v943
        %960 = vst [vmem:[%s241 + $0x20] sm:$0xff] %v944
        %961 = vst [vmem:[%s241 + $0x28] sm:$0xff] %v945
        %962 = vst [vmem:[%s241 + $0x30] sm:$0xff] %v946
        %963 = vst [vmem:[%s241 + $0x38] sm:$0xff] %v947
        %964 = vst [vmem:[%s241 + $0x40] sm:$0xff] %v948
        %965 = vst [vmem:[%s241 + $0x48] sm:$0xff] %v949
        %966 = vst [vmem:[%s241 + $0x50] sm:$0xff] %v950
        %967 = vst [vmem:[%s241 + $0x58] sm:$0xff] %v951
        %968 = vst [vmem:[%s241 + $0x60] sm:$0xff] %v952
        %969 = vst [vmem:[%s241 + $0x68] sm:$0xff] %v953
        %970 = vst [vmem:[%s241 + $0x70] sm:$0xff] %v954
        %971 = vst [vmem:[%s241 + $0x78] sm:$0xff] %v955
        %s972 = sand.u32 %s153, 1
        %s973 = scalar_lea.sflag [#allocation3], %s972
        %s974 = sand.u32 %s153, 1
        %s975 = smul.addr %s974, 128
        %s976 = scalar_lea.vmem [#allocation2], %s975
        // Predicated region
        $region41: #{tpu_custom_call.1} parent=39 // pred_check
          %p977 = pneg %p163
        $region42: #{tpu_custom_call.1} parent=39 // pred_check_branch
          %979 = sbr.rel (%p977) target = $region44
        $region43: #{tpu_custom_call.1} parent=39 // pred_region
          %s980 = smul.u32 8, %s24
          %s982 = ssub.s32 2048, 2048
          %983 = vsyncadd %s973, %s982
          %s984 = smul.addr %s980, 2
          %s985 = smul.addr %s23, 32
          %s986 = sadd.s32 %s984, %s985
          %s987 = smul.addr %s986, 128
          %s988 = scalar_lea.hbm %s5, %s987
          %s989 = sshll.u32 %s976, 4
          %s990 = int_to_ptr.vmem [resolvable:$true] %s989
          %995 = dma.vmem_to_hbm [thread:$0]  %s990, 2048, %s988, %s973, 128, 128, 8
        $region44: #{tpu_custom_call.1} parent=39 // pred_fallthru
          _
      $region40: #{tpu_custom_call.1} parent=5 // pred_fallthru
        _
      %p996 = scmp.le.s32.totalorder 2, %s14
      // Predicated region
      $region45: #{tpu_custom_call.1} parent=5 // pred_check
        %p997 = pneg %p996
      $region46: #{tpu_custom_call.1} parent=5 // pred_check_branch
        %999 = sbr.rel (%p997) target = $region48
      $region47: #{tpu_custom_call.1} parent=5 // pred_region
        %s1000 = ssub.s32 %s14, 2
        // Predicated region
        $region49: #{tpu_custom_call.1} parent=47 // pred_check
          %p1001 = pneg %p169
        $region50: #{tpu_custom_call.1} parent=47 // pred_check_branch
          %1003 = sbr.rel (%p1001) target = $region52
        $region51: #{tpu_custom_call.1} parent=47 // pred_region
          %s1004 = sand.u32 %s154, 1
          %s1005 = scalar_lea.sflag [#allocation3], %s1004
          %s1006 = sand.u32 %s154, 1
          %s1007 = smul.addr %s1006, 128
          %s1008 = scalar_lea.vmem [#allocation2], %s1007
          %1009 = dma.done %s1005, 2048
        $region52: #{tpu_custom_call.1} parent=47 // pred_fallthru
          _
      $region48: #{tpu_custom_call.1} parent=5 // pred_fallthru
        _
    $region6: #{tpu_custom_call.1} parent=1 // loop_footer
      %s18 = sadd.s32 1, %s14
    $region7: #{tpu_custom_call.1} parent=1 // loop_footer_branch
      %13 = sbr.rel target = $region3
    $region8: #{tpu_custom_call.1} parent=1 // loop_exit
      _
    %1010 = vsyncpa [#allocation3], 1
    %s1011 = scalar_lea.sflag [#allocation3], 1
    %1012 = vsyncpa %s1011, 1

</llo_original>
